<compile_context>
chip_gen: v7x
topology: tpu7x:2x2x1
jax: 0.10.0
libtpu: 0.0.40
codegen_flags: <defaults>
</compile_context>

<pallas_src>
import functools
import math

import jax
import jax.numpy as jnp
from jax.experimental import pallas as pl
from jax.experimental.pallas import tpu as pltpu


def _round_up(x, m):
    return ((x + m - 1) // m) * m


def _relation_link_kernel(cn_ref, cv_ref, w1_ref, b1_ref, w2_ref, b2_ref,
                          out_ref, *, chunk_lanes, n_chunks):
    # cn_ref : [tn, E]            (VMEM)
    # cv_ref : [tn, L*E]          (VMEM, lane-dense)
    # w1_ref : [E, H], b1_ref : [1, H], w2_ref : [1, H]   (VMEM, grid-resident)
    # b2_ref : [1, 1]             (SMEM scalar)
    # out_ref: [tn, L*E]
    cn = cn_ref[...]                                               # [tn, E]

    # Tiny gate MLP: Linear(E->H) -> ReLU -> Linear(H->1) -> Sigmoid, f32 acc.
    h = jnp.dot(cn, w1_ref[...], preferred_element_type=jnp.float32)
    h = jnp.maximum(h + b1_ref[...], 0.0)                          # [tn, H] f32
    # Single-output linear: VPU/XLU reduction, not a 1-lane MXU matmul.
    g = jnp.sum(h * w2_ref[...], axis=-1, keepdims=True) + b2_ref[0, 0]
    gate = jax.nn.sigmoid(g)                                       # [tn, 1] f32

    # Gate cn; cast once to the streaming dtype (for bf16 cv this matches
    # PyTorch low-precision behavior: the broadcast-add runs in cv's dtype).
    gated = (cn.astype(jnp.float32) * gate).astype(cv_ref.dtype)   # [tn, E]

    # Replicate only to one chunk width (lcm(E,128) lanes when possible) and
    # reuse it across each 128-lane-aligned chunk of the flattened row.
    e = gated.shape[-1]
    reps = chunk_lanes // e
    gated_chunk = jnp.tile(gated, (1, reps)) if reps > 1 else gated
    for c in range(n_chunks):      # static & short; slices are 128-aligned
        sl = slice(c * chunk_lanes, (c + 1) * chunk_lanes)
        out_ref[:, sl] = (cv_ref[:, sl] + gated_chunk).astype(out_ref.dtype)


def _vmem_capacity_bytes():
    try:
        cap = getattr(pltpu.get_tpu_info(), "vmem_capacity_bytes", None)
        if cap:
            return int(cap)
    except Exception:
        pass
    return 64 << 20   # conservative fallback (v7x per-TensorCore)


def _choose_tile_n(N, LE, E, cv_bytes, cn_bytes, *, min_steps=4):
    """Sublane-aligned row-tile size for the N axis.

    Budget: double-buffered cv-in + out + cn-in per grid step must fit a
    conservative slice of VMEM; cv/out tiles are capped near 8 MiB (past that
    the ~0.35us per-step overhead is fully amortized); and the grid is kept at
    least `min_steps` long so pipelining + megacore sharding stay engaged.
    """
    sublane = max(8, 32 // cv_bytes, 32 // cn_bytes)   # f32:8, bf16:16, int8:32
    vmem_budget = min(44 << 20, int(_vmem_capacity_bytes() * 0.7))
    per_row = 2 * (2 * LE * cv_bytes + E * cn_bytes)   # 2 bufs x (cv-in+out+cn-in)
    budget_rows = max(sublane, (vmem_budget // per_row) // sublane * sublane)
    cap_rows = max(sublane, ((8 << 20) // (LE * cv_bytes)) // sublane * sublane)
    steps_rows = max(sublane, _round_up(-(-N // min_steps), sublane))
    tile_n = min(budget_rows, cap_rows, steps_rows)
    if tile_n >= N:
        tile_n = N     # single full-extent block (always a legal block shape)
    return tile_n


def _choose_chunk(E, LE, *, max_chunks=16):
    """Lane chunk width for the broadcast-add: a multiple of lcm(E, 128) that
    divides L*E, keeping the per-row chunk loop short and stores unmasked."""
    base = math.lcm(E, 128)
    if LE % base == 0:
        total = LE // base
        for k in range(1, total + 1):
            if total % k == 0 and total // k <= max_chunks:
                return base * k, total // k
    # TODO(synk): if L*E is not a multiple of 128, pad the embedding axis in the
    # caller to keep the writeback unmasked; here we fall back to one full-width
    # chunk (masked vst on the trailing lanes).
    return LE, 1


def relation_link(cn_emb, cv_emb, w1, b1, w2, b2, *, tile_n=None,
                  donate_cv=False):
    N, E = cn_emb.shape
    N2, L, E2 = cv_emb.shape
    assert N2 == N and E2 == E
    H = w1.shape[1]
    LE = L * E

    cv_bytes = jnp.dtype(cv_emb.dtype).itemsize
    cn_bytes = jnp.dtype(cn_emb.dtype).itemsize
    if tile_n is None:
        tile_n = _choose_tile_n(N, LE, E, cv_bytes, cn_bytes)
    assert tile_n == N or tile_n % 8 == 0
    grid = ((N + tile_n - 1) // tile_n,)   # ragged last block; no HBM padding

    chunk_lanes, n_chunks = _choose_chunk(E, LE)

    cv_flat = cv_emb.reshape(N, LE)        # free: row-major contiguous
    b1_2d = b1.reshape(1, H)
    w2_row = w2.reshape(1, H)              # [H, 1] -> [1, H] row vector
    b2_2d = b2.reshape(1, 1)

    kernel = functools.partial(_relation_link_kernel,
                               chunk_lanes=chunk_lanes, n_chunks=n_chunks)

    # Scoped-VMEM budget: double-buffered cv-in + out + cn-in tiles, the
    # grid-resident weights, plus a small margin. Safe on all generations
    # (cap well below v7x's 64 MiB/TC physical VMEM).
    need = (2 * (2 * LE * cv_bytes + E * cn_bytes) * tile_n
            + 2 * (E * H + 2 * H) * 4 + (2 << 20))
    vmem_limit = min(48 << 20, max(32 << 20, need))

    out_flat = pl.pallas_call(
        kernel,
        out_shape=jax.ShapeDtypeStruct((N, LE), cv_emb.dtype),
        grid_spec=pltpu.PrefetchScalarGridSpec(
            num_scalar_prefetch=0,
            grid=grid,
            in_specs=[
                pl.BlockSpec((tile_n, E), lambda i: (i, 0)),      # cn tile
                pl.BlockSpec((tile_n, LE), lambda i: (i, 0)),     # cv tile
                pl.BlockSpec((E, H), lambda i: (0, 0)),           # w1 (resident)
                pl.BlockSpec((1, H), lambda i: (0, 0)),           # b1
                pl.BlockSpec((1, H), lambda i: (0, 0)),           # w2 row
                pl.BlockSpec((1, 1), lambda i: (0, 0),
                             memory_space=pltpu.MemorySpace.SMEM),  # b2 scalar
            ],
            out_specs=pl.BlockSpec((tile_n, LE), lambda i: (i, 0)),
        ),
        compiler_params=pltpu.CompilerParams(
            dimension_semantics=("parallel",),
            vmem_limit_bytes=vmem_limit,
        ),
        # Only alias when the caller genuinely donates cv_emb; otherwise XLA
        # keeps a defensive copy and this is a no-op perf-wise.
        input_output_aliases=({1: 0} if donate_cv else {}),
    )(cn_emb, cv_flat, w1, b1_2d, w2_row, b2_2d)

    return out_flat.reshape(N, L, E)


def relation_link_ref(cn_emb, cv_emb, w1, b1, w2, b2):
    h = jnp.maximum(cn_emb @ w1 + b1, 0.0)
    gate = jax.nn.sigmoid(h @ w2 + b2)            # [N, 1]
    return cv_emb + (cn_emb * gate)[:, None, :]


if __name__ == "__main__":
    key = jax.random.PRNGKey(0)
    k_cn, k_cv, k_w1, k_b1, k_w2, k_b2 = jax.random.split(key, 6)

    # Small but non-degenerate: N big enough for a multi-step grid.
    N, L, E, H = 256, 8, 32, 32   # batch, x_len, emb_size, hidden_size

    cn_emb = jax.random.normal(k_cn, (N, E), dtype=jnp.float32)
    cv_emb = jax.random.normal(k_cv, (N, L, E), dtype=jnp.float32)

    # Deterministic Linear params (uniform, roughly matching nn.Linear init scale).
    lim1 = 1.0 / (E ** 0.5)
    lim2 = 1.0 / (H ** 0.5)
    w1 = jax.random.uniform(k_w1, (E, H), minval=-lim1, maxval=lim1, dtype=jnp.float32)
    b1 = jax.random.uniform(k_b1, (H,), minval=-lim1, maxval=lim1, dtype=jnp.float32)
    w2 = jax.random.uniform(k_w2, (H, 1), minval=-lim2, maxval=lim2, dtype=jnp.float32)
    b2 = jax.random.uniform(k_b2, (1,), minval=-lim2, maxval=lim2, dtype=jnp.float32)

    out = relation_link(cn_emb, cv_emb, w1, b1, w2, b2)
    out = jax.block_until_ready(out)

    ref = relation_link_ref(cn_emb, cv_emb, w1, b1, w2, b2)
    assert out.shape == (N, L, E)
    assert jnp.allclose(out, ref, atol=1e-5, rtol=1e-5)

    # Also exercise an N that is NOT a multiple of the tile (ragged last block).
    N2 = 100
    cn2 = jax.random.normal(k_cn, (N2, E), dtype=jnp.float32)
    cv2 = jax.random.normal(k_cv, (N2, L, E), dtype=jnp.float32)
    out2 = jax.block_until_ready(relation_link(cn2, cv2, w1, b1, w2, b2))
    ref2 = relation_link_ref(cn2, cv2, w1, b1, w2, b2)
    assert jnp.allclose(out2, ref2, atol=1e-5, rtol=1e-5)

    print("KERNEL_OK")
</pallas_src>

<mosaic_0001>
module attributes {stable_mosaic.version = 11 : i64} {
  func.func @_relation_link_kernel(%arg0: i32, %arg1: memref<64x32xf32, #tpu.memory_space<vmem>>, %arg2: memref<64x256xf32, #tpu.memory_space<vmem>>, %arg3: memref<32x32xf32, #tpu.memory_space<vmem>>, %arg4: memref<1x32xf32, #tpu.memory_space<vmem>>, %arg5: memref<1x32xf32, #tpu.memory_space<vmem>>, %arg6: memref<1x1xf32, #tpu.memory_space<smem>>, %arg7: memref<64x256xf32, #tpu.memory_space<vmem>>) attributes {dimension_semantics = [#tpu.dimension_semantics<parallel>], iteration_bounds = array<i64: 4>, scalar_prefetch = 0 : i64, scratch_operands = 0 : i64, tpu.core_type = #tpu.core_type<tc>, window_params = [{transform_indices = @transform_0, window_bounds = array<i64: 64, 32>}, {transform_indices = @transform_1, window_bounds = array<i64: 64, 256>}, {pipeline_mode = #tpu.pipeline_mode<synchronous>, transform_indices = @transform_2, window_bounds = array<i64: 32, 32>}, {pipeline_mode = #tpu.pipeline_mode<synchronous>, transform_indices = @transform_3, window_bounds = array<i64: 1, 32>}, {pipeline_mode = #tpu.pipeline_mode<synchronous>, transform_indices = @transform_4, window_bounds = array<i64: 1, 32>}, {transform_indices = @transform_5, window_bounds = array<i64: 1, 1>}, {transform_indices = @transform_6, window_bounds = array<i64: 64, 256>}]} {
    %c0 = arith.constant 0 : index
    %c0_0 = arith.constant 0 : index
    %0 = vector.load %arg1[%c0, %c0_0] : memref<64x32xf32, #tpu.memory_space<vmem>>, vector<64x32xf32>
    %c0_1 = arith.constant 0 : index
    %c0_2 = arith.constant 0 : index
    %1 = vector.load %arg3[%c0_1, %c0_2] : memref<32x32xf32, #tpu.memory_space<vmem>>, vector<32x32xf32>
    %cst = arith.constant dense<0.000000e+00> : vector<64x32xf32>
    %2 = tpu.matmul %0, %1, %cst {dimension_numbers = #tpu.dot_dimension_numbers<[1], [0], [0], [1], [0, 0, 1, 1], [], []>} : vector<64x32xf32>, vector<32x32xf32>, vector<64x32xf32> -> vector<64x32xf32>
    %c0_3 = arith.constant 0 : index
    %c0_4 = arith.constant 0 : index
    %3 = vector.load %arg4[%c0_3, %c0_4] : memref<1x32xf32, #tpu.memory_space<vmem>>, vector<1x32xf32>
    %4 = vector.broadcast %3 : vector<1x32xf32> to vector<64x32xf32>
    %5 = arith.addf %2, %4 : vector<64x32xf32>
    %cst_5 = arith.constant 0.000000e+00 : f32
    %6 = vector.broadcast %cst_5 : f32 to vector<64x32xf32>
    %7 = arith.maximumf %5, %6 : vector<64x32xf32>
    %c0_6 = arith.constant 0 : index
    %c0_7 = arith.constant 0 : index
    %8 = vector.load %arg5[%c0_6, %c0_7] : memref<1x32xf32, #tpu.memory_space<vmem>>, vector<1x32xf32>
    %9 = vector.broadcast %8 : vector<1x32xf32> to vector<64x32xf32>
    %10 = arith.mulf %7, %9 : vector<64x32xf32>
    %cst_8 = arith.constant dense<0.000000e+00> : vector<64xf32>
    %11 = vector.multi_reduction <add>, %10, %cst_8 [1] : vector<64x32xf32> to vector<64xf32>
    %12 = vector.shape_cast %11 : vector<64xf32> to vector<64x1xf32>
    %c0_9 = arith.constant 0 : index
    %c0_10 = arith.constant 0 : index
    %13 = memref.load %arg6[%c0_9, %c0_10] : memref<1x1xf32, #tpu.memory_space<smem>>
    %14 = vector.broadcast %13 : f32 to vector<64x1xf32>
    %15 = arith.addf %12, %14 : vector<64x1xf32>
    %16 = arith.negf %15 : vector<64x1xf32>
    %17 = math.exp %16 : vector<64x1xf32>
    %cst_11 = arith.constant 1.000000e+00 : f32
    %18 = vector.broadcast %cst_11 : f32 to vector<64x1xf32>
    %19 = arith.addf %18, %17 : vector<64x1xf32>
    %20 = arith.divf %18, %19 : vector<64x1xf32>
    %21 = vector.broadcast %20 : vector<64x1xf32> to vector<64x32xf32>
    %22 = arith.mulf %0, %21 : vector<64x32xf32>
    %23 = tpu.concatenate %22, %22, %22, %22 in 1 : vector<64x32xf32>, vector<64x32xf32>, vector<64x32xf32>, vector<64x32xf32> -> vector<64x128xf32>
    %c0_12 = arith.constant 0 : index
    %c0_13 = arith.constant 0 : index
    %24 = vector.load %arg2[%c0_12, %c0_13] : memref<64x256xf32, #tpu.memory_space<vmem>>, vector<64x128xf32>
    %25 = arith.addf %24, %23 : vector<64x128xf32>
    %c0_14 = arith.constant 0 : index
    %c0_15 = arith.constant 0 : index
    %26 = vector.load %arg7[%c0_14, %c0_15] : memref<64x256xf32, #tpu.memory_space<vmem>>, vector<64x128xf32>
    tpu.vector_store %arg7[%c0_14, %c0_15], %25 {strides = array<i32>} : memref<64x256xf32, #tpu.memory_space<vmem>>, vector<64x128xf32>,
    %c0_16 = arith.constant 0 : index
    %c128 = arith.constant 128 : index
    %27 = vector.load %arg2[%c0_16, %c128] : memref<64x256xf32, #tpu.memory_space<vmem>>, vector<64x128xf32>
    %28 = arith.addf %27, %23 : vector<64x128xf32>
    %c0_17 = arith.constant 0 : index
    %c128_18 = arith.constant 128 : index
    %29 = vector.load %arg7[%c0_17, %c128_18] : memref<64x256xf32, #tpu.memory_space<vmem>>, vector<64x128xf32>
    tpu.vector_store %arg7[%c0_17, %c128_18], %28 {strides = array<i32>} : memref<64x256xf32, #tpu.memory_space<vmem>>, vector<64x128xf32>,
    return
  }
  func.func @transform_0(%arg0: i32) -> (i32, i32) {
    %c0_i32 = arith.constant 0 : i32
    %c0_i32_0 = arith.constant 0 : i32
    return %arg0, %c0_i32 : i32, i32
  }
  func.func @transform_1(%arg0: i32) -> (i32, i32) {
    %c0_i32 = arith.constant 0 : i32
    %c0_i32_0 = arith.constant 0 : i32
    return %arg0, %c0_i32 : i32, i32
  }
  func.func @transform_2(%arg0: i32) -> (i32, i32) {
    %c0_i32 = arith.constant 0 : i32
    %c0_i32_0 = arith.constant 0 : i32
    %c0_i32_1 = arith.constant 0 : i32
    return %c0_i32, %c0_i32_0 : i32, i32
  }
  func.func @transform_3(%arg0: i32) -> (i32, i32) {
    %c0_i32 = arith.constant 0 : i32
    %c0_i32_0 = arith.constant 0 : i32
    %c0_i32_1 = arith.constant 0 : i32
    return %c0_i32, %c0_i32_0 : i32, i32
  }
  func.func @transform_4(%arg0: i32) -> (i32, i32) {
    %c0_i32 = arith.constant 0 : i32
    %c0_i32_0 = arith.constant 0 : i32
    %c0_i32_1 = arith.constant 0 : i32
    return %c0_i32, %c0_i32_0 : i32, i32
  }
  func.func @transform_5(%arg0: i32) -> (i32, i32) {
    %c0_i32 = arith.constant 0 : i32
    %c0_i32_0 = arith.constant 0 : i32
    %c0_i32_1 = arith.constant 0 : i32
    return %c0_i32, %c0_i32_0 : i32, i32
  }
  func.func @transform_6(%arg0: i32) -> (i32, i32) {
    %c0_i32 = arith.constant 0 : i32
    %c0_i32_0 = arith.constant 0 : i32
    return %arg0, %c0_i32 : i32, i32
  }
}

</mosaic_0001>

<llo_original>
// kernel: tpu_custom_call.1
$region0: #{tpu_custom_call.1}
  #allocation0 [shape = 'u32[]', space=smem, size = 0x4, offset = 0x4, fixed_abs, tag = 'smem constant byte address 0x4 - core index']
  #allocation1 [shape = 'u32[144,128]{1,0:T(1,128)}', space=vmem, size = 0x12000, scoped, tag = 'internal scratch']
  #allocation2 [shape = 'f32[1,1]{1,0:T(1,128)S(6)}', space=smem, size = 0x200, scoped, tag = 'scoped memory for tpu_custom_call.1']
  %s0 = inlined_call_operand.vmem [shape: f32[256,32], index: 0, kind: input, shape index: {}]
  %s1 = inlined_call_operand.hbm [shape: f32[256,256], index: 1, kind: input, shape index: {}]
  %s2 = inlined_call_operand.vmem [shape: f32[32,32], index: 2, kind: input, shape index: {}]
  %s3 = inlined_call_operand.vmem [shape: f32[1,32], index: 3, kind: input, shape index: {}]
  %s4 = inlined_call_operand.vmem [shape: f32[1,32], index: 4, kind: input, shape index: {}]
  %s5 = inlined_call_operand.<no memory space> [shape: f32[1,1], index: 5, kind: input, shape index: {}]
  %s6 = inlined_call_operand.hbm [shape: f32[256,256], index: 6, kind: output, shape index: {}]
  %s7 = sld [smem:[#allocation0]]
  $region61: #{tpu_custom_call.1} parent=0
    _
  %s9 = ssub.s32 1, %s7
  %s10 = scalar_select 0, %s9, %s7
  %11 = sst [smem:[#allocation2]] %s5
  $region1: #{tpu_custom_call.1} parent=0
    #allocation3 [shape = 'u8[131072]{0}', space=vmem, size = 0x20000, scoped, tag = 'input window, operand 1']
    #allocation4 [shape = 's32[2]{0}', space=sflag, size = 0x8, scoped, tag = 'scoped memory for tpu_custom_call.1']
    #allocation5 [shape = 's32[2]{0}', space=sflag, size = 0x8, scoped, tag = 'scoped memory for tpu_custom_call.1']
    #allocation6 [shape = 'u8[131072]{0}', space=vmem, size = 0x20000, scoped, tag = 'output window, operand 0']
    %12 = vsyncpa [#allocation4], 0
    %s13 = scalar_lea.sflag [#allocation4], 1
    %14 = vsyncpa %s13, 0
    %15 = vsyncpa [#allocation5], 0
    %s16 = scalar_lea.sflag [#allocation5], 1
    %17 = vsyncpa %s16, 0
    loop: start=0, step=1, limit=6
    $region2: #{tpu_custom_call.1} parent=1 // loop_pre_header
      _
    $region3: #{tpu_custom_call.1} parent=1 // loop_header
      %s19 = sphi 0, %s23
      %p20 = scmp.ge.s32.totalorder %s19, 6
      %s29 = sphi 0, %s31
      %s32 = sphi 0, %s29
      %s33 = sphi 0, %s32
      %s49 = sphi 0, %s33
      %s55 = sphi 0, %s57
      %s58 = sphi 0, %s55
      %s59 = sphi 0, %s58
      %s75 = sphi 0, %s59
      %s79 = sphi 0, %s79
      %s81 = sphi 0, %s79
      %s82 = sphi 0, %s81
      %s96 = sphi 0, %s82
      %s100 = sphi 0, %s100
      %s102 = sphi 0, %s100
      %s103 = sphi 0, %s102
      %s117 = sphi 0, %s103
      %s121 = sphi 0, %s121
      %s123 = sphi 0, %s121
      %s124 = sphi 0, %s123
      %s138 = sphi 0, %s124
      %s142 = sphi 0, %s142
      %s144 = sphi 0, %s142
      %s145 = sphi 0, %s144
      %s159 = sphi 0, %s145
      %s165 = sphi 0, %s167
      %s168 = sphi 0, %s165
      %s169 = sphi 0, %s168
      %s185 = sphi 0, %s169
    $region4: #{tpu_custom_call.1} parent=1 // loop_header_branch
      %22 = sbr.rel (%p20) target = $region8
    $region5: #{tpu_custom_call.1} parent=1 // loop_body
      %s24 = ssub.s32 %s19, 1
      %s25 = ssub.s32 %s19, 2
      %s26 = sadd.s32 %s19, 1
      %s27 = ssub.s32 %s19, %s26
      %p28 = scmp.eq.s32.totalorder %s27, 0
      %s30 = sadd.s32 %s29, 1
      %s31 = scalar_select %p28, %s29, %s30
      %p34 = pneg %p28
      %p35 = scmp.eq.s32.totalorder %s19, 3
      %p36 = por %p34, %p35
      %p37 = scmp.ne.s32.totalorder %s29, %s32
      %p38 = scmp.eq.s32.totalorder %s19, 0
      %p39 = por %p37, %p38
      %p40 = scmp.ne.s32.totalorder %s29, %s32
      %p41 = scmp.eq.s32.totalorder %s24, 3
      %p42 = por %p40, %p41
      %p43 = scmp.ne.s32.totalorder %s32, %s33
      %p44 = scmp.eq.s32.totalorder %s24, 0
      %p45 = por %p43, %p44
      %p46 = scmp.ne.s32.totalorder %s32, %s33
      %p47 = scmp.eq.s32.totalorder %s25, 3
      %p48 = por %p46, %p47
      %p50 = scmp.ne.s32.totalorder %s33, %s49
      %p51 = scmp.eq.s32.totalorder %s25, 0
      %p52 = por %p50, %p51
      %s53 = ssub.s32 %s19, %s26
      %p54 = scmp.eq.s32.totalorder %s53, 0
      %s56 = sadd.s32 %s55, 1
      %s57 = scalar_select %p54, %s55, %s56
      %p60 = pneg %p54
      %p61 = scmp.eq.s32.totalorder %s19, 3
      %p62 = por %p60, %p61
      %p63 = scmp.ne.s32.totalorder %s55, %s58
      %p64 = scmp.eq.s32.totalorder %s19, 0
      %p65 = por %p63, %p64
      %p66 = scmp.ne.s32.totalorder %s55, %s58
      %p67 = scmp.eq.s32.totalorder %s24, 3
      %p68 = por %p66, %p67
      %p69 = scmp.ne.s32.totalorder %s58, %s59
      %p70 = scmp.eq.s32.totalorder %s24, 0
      %p71 = por %p69, %p70
      %p72 = scmp.ne.s32.totalorder %s58, %s59
      %p73 = scmp.eq.s32.totalorder %s25, 3
      %p74 = por %p72, %p73
      %p76 = scmp.ne.s32.totalorder %s59, %s75
      %p77 = scmp.eq.s32.totalorder %s25, 0
      %p78 = por %p76, %p77
      %s80 = sadd.s32 %s79, 1
      %p83 = scmp.eq.s32.totalorder %s19, 3
      %p84 = scmp.ne.s32.totalorder %s79, %s81
      %p85 = scmp.eq.s32.totalorder %s19, 0
      %p86 = por %p84, %p85
      %p87 = scmp.ne.s32.totalorder %s79, %s81
      %p88 = scmp.eq.s32.totalorder %s24, 3
      %p89 = por %p87, %p88
      %p90 = scmp.ne.s32.totalorder %s81, %s82
      %p91 = scmp.eq.s32.totalorder %s24, 0
      %p92 = por %p90, %p91
      %p93 = scmp.ne.s32.totalorder %s81, %s82
      %p94 = scmp.eq.s32.totalorder %s25, 3
      %p95 = por %p93, %p94
      %p97 = scmp.ne.s32.totalorder %s82, %s96
      %p98 = scmp.eq.s32.totalorder %s25, 0
      %p99 = por %p97, %p98
      %s101 = sadd.s32 %s100, 1
      %p104 = scmp.eq.s32.totalorder %s19, 3
      %p105 = scmp.ne.s32.totalorder %s100, %s102
      %p106 = scmp.eq.s32.totalorder %s19, 0
      %p107 = por %p105, %p106
      %p108 = scmp.ne.s32.totalorder %s100, %s102
      %p109 = scmp.eq.s32.totalorder %s24, 3
      %p110 = por %p108, %p109
      %p111 = scmp.ne.s32.totalorder %s102, %s103
      %p112 = scmp.eq.s32.totalorder %s24, 0
      %p113 = por %p111, %p112
      %p114 = scmp.ne.s32.totalorder %s102, %s103
      %p115 = scmp.eq.s32.totalorder %s25, 3
      %p116 = por %p114, %p115
      %p118 = scmp.ne.s32.totalorder %s103, %s117
      %p119 = scmp.eq.s32.totalorder %s25, 0
      %p120 = por %p118, %p119
      %s122 = sadd.s32 %s121, 1
      %p125 = scmp.eq.s32.totalorder %s19, 3
      %p126 = scmp.ne.s32.totalorder %s121, %s123
      %p127 = scmp.eq.s32.totalorder %s19, 0
      %p128 = por %p126, %p127
      %p129 = scmp.ne.s32.totalorder %s121, %s123
      %p130 = scmp.eq.s32.totalorder %s24, 3
      %p131 = por %p129, %p130
      %p132 = scmp.ne.s32.totalorder %s123, %s124
      %p133 = scmp.eq.s32.totalorder %s24, 0
      %p134 = por %p132, %p133
      %p135 = scmp.ne.s32.totalorder %s123, %s124
      %p136 = scmp.eq.s32.totalorder %s25, 3
      %p137 = por %p135, %p136
      %p139 = scmp.ne.s32.totalorder %s124, %s138
      %p140 = scmp.eq.s32.totalorder %s25, 0
      %p141 = por %p139, %p140
      %s143 = sadd.s32 %s142, 1
      %p146 = scmp.eq.s32.totalorder %s19, 3
      %p147 = scmp.ne.s32.totalorder %s142, %s144
      %p148 = scmp.eq.s32.totalorder %s19, 0
      %p149 = por %p147, %p148
      %p150 = scmp.ne.s32.totalorder %s142, %s144
      %p151 = scmp.eq.s32.totalorder %s24, 3
      %p152 = por %p150, %p151
      %p153 = scmp.ne.s32.totalorder %s144, %s145
      %p154 = scmp.eq.s32.totalorder %s24, 0
      %p155 = por %p153, %p154
      %p156 = scmp.ne.s32.totalorder %s144, %s145
      %p157 = scmp.eq.s32.totalorder %s25, 3
      %p158 = por %p156, %p157
      %p160 = scmp.ne.s32.totalorder %s145, %s159
      %p161 = scmp.eq.s32.totalorder %s25, 0
      %p162 = por %p160, %p161
      %s163 = ssub.s32 %s19, %s26
      %p164 = scmp.eq.s32.totalorder %s163, 0
      %s166 = sadd.s32 %s165, 1
      %s167 = scalar_select %p164, %s165, %s166
      %p170 = pneg %p164
      %p171 = scmp.eq.s32.totalorder %s19, 3
      %p172 = por %p170, %p171
      %p173 = scmp.ne.s32.totalorder %s165, %s168
      %p174 = scmp.eq.s32.totalorder %s19, 0
      %p175 = por %p173, %p174
      %p176 = scmp.ne.s32.totalorder %s165, %s168
      %p177 = scmp.eq.s32.totalorder %s24, 3
      %p178 = por %p176, %p177
      %p179 = scmp.ne.s32.totalorder %s168, %s169
      %p180 = scmp.eq.s32.totalorder %s24, 0
      %p181 = por %p179, %p180
      %p182 = scmp.ne.s32.totalorder %s168, %s169
      %p183 = scmp.eq.s32.totalorder %s25, 3
      %p184 = por %p182, %p183
      %p186 = scmp.ne.s32.totalorder %s169, %s185
      %p187 = scmp.eq.s32.totalorder %s25, 0
      %p188 = por %p186, %p187
      %p189 = scmp.le.s32.totalorder 1, %s19
      %p190 = scmp.lt.s32.totalorder %s19, 5
      %p191 = pnand %p189, %p190
      %p192 = pneg %p191
      // Predicated region
      $region9: #{tpu_custom_call.1} parent=5 // pred_check
        _
      $region10: #{tpu_custom_call.1} parent=5 // pred_check_branch
        %194 = sbr.rel (%p191) target = $region12
      $region11: #{tpu_custom_call.1} parent=5 // pred_region
        %s195 = ssub.s32 %s19, 1
        // Predicated region
        $region13: #{tpu_custom_call.1} parent=11 // pred_check
          %p196 = pneg %p92
        $region14: #{tpu_custom_call.1} parent=11 // pred_check_branch
          %198 = sbr.rel (%p196) target = $region16
        $region15: #{tpu_custom_call.1} parent=11 // pred_region
          _
        $region16: #{tpu_custom_call.1} parent=11 // pred_fallthru
          _
        // Predicated region
        $region17: #{tpu_custom_call.1} parent=11 // pred_check
          %p199 = pneg %p113
        $region18: #{tpu_custom_call.1} parent=11 // pred_check_branch
          %201 = sbr.rel (%p199) target = $region20
        $region19: #{tpu_custom_call.1} parent=11 // pred_region
          _
        $region20: #{tpu_custom_call.1} parent=11 // pred_fallthru
          _
        // Predicated region
        $region21: #{tpu_custom_call.1} parent=11 // pred_check
          %p202 = pneg %p134
        $region22: #{tpu_custom_call.1} parent=11 // pred_check_branch
          %204 = sbr.rel (%p202) target = $region24
        $region23: #{tpu_custom_call.1} parent=11 // pred_region
          _
        $region24: #{tpu_custom_call.1} parent=11 // pred_fallthru
          _
        // Predicated region
        $region25: #{tpu_custom_call.1} parent=11 // pred_check
          %p205 = pneg %p155
        $region26: #{tpu_custom_call.1} parent=11 // pred_check_branch
          %207 = sbr.rel (%p205) target = $region28
        $region27: #{tpu_custom_call.1} parent=11 // pred_region
          _
        $region28: #{tpu_custom_call.1} parent=11 // pred_fallthru
          _
      $region12: #{tpu_custom_call.1} parent=5 // pred_fallthru
        _
      %p208 = scmp.lt.s32.totalorder %s19, 4
      // Predicated region
      $region29: #{tpu_custom_call.1} parent=5 // pred_check
        %p209 = pneg %p208
      $region30: #{tpu_custom_call.1} parent=5 // pred_check_branch
        %211 = sbr.rel (%p209) target = $region32
      $region31: #{tpu_custom_call.1} parent=5 // pred_region
        // Predicated region
        $region33: #{tpu_custom_call.1} parent=31 // pred_check
          %p212 = pneg %p39
        $region34: #{tpu_custom_call.1} parent=31 // pred_check_branch
          %214 = sbr.rel (%p212) target = $region36
        $region35: #{tpu_custom_call.1} parent=31 // pred_region
          %s215 = smul.u32 8, %s19
          %p216 = scmp.lt.s32.totalorder %s215, 31
          %s217 = scalar_select %p216, %s215, 31
          %s218 = smul.addr %s217, 8
          %s219 = scalar_lea.vmem %s0, %s218
          %s220 = smul.u32 8, %s19
        $region36: #{tpu_custom_call.1} parent=31 // pred_fallthru
          _
        // Predicated region
        $region37: #{tpu_custom_call.1} parent=31 // pred_check
          %p221 = pneg %p65
        $region38: #{tpu_custom_call.1} parent=31 // pred_check_branch
          %223 = sbr.rel (%p221) target = $region40
        $region39: #{tpu_custom_call.1} parent=31 // pred_region
          %s224 = sand.u32 %s55, 1
          %s225 = scalar_lea.sflag [#allocation4], %s224
          %s226 = sand.u32 %s55, 1
          %s227 = smul.addr %s226, 128
          %s228 = scalar_lea.vmem [#allocation3], %s227
          %s229 = smul.u32 8, %s19
          %s231 = ssub.s32 2048, 2048
          %232 = vsyncadd %s225, %s231
          %s233 = smul.addr %s229, 2
          %s234 = smul.addr %s233, 128
          %s235 = scalar_lea.hbm %s1, %s234
          %s236 = sshll.u32 %s228, 4
          %s237 = int_to_ptr.vmem [resolvable:$true] %s236
          %242 = dma.hbm_to_vmem [thread:$0]  %s235, 2048, %s237, %s225, 256, 256, 16
        $region40: #{tpu_custom_call.1} parent=31 // pred_fallthru
          _
      $region32: #{tpu_custom_call.1} parent=5 // pred_fallthru
        _
      %p243 = scmp.le.s32.totalorder 1, %s19
      %p244 = scmp.lt.s32.totalorder %s19, 5
      %p245 = pnand %p243, %p244
      %p246 = pneg %p245
      // Predicated region
      $region41: #{tpu_custom_call.1} parent=5 // pred_check
        _
      $region42: #{tpu_custom_call.1} parent=5 // pred_check_branch
        %248 = sbr.rel (%p245) target = $region44
      $region43: #{tpu_custom_call.1} parent=5 // pred_region
        %s249 = ssub.s32 %s19, 1
        %s250 = sand.u32 %s58, 1
        %s251 = scalar_lea.sflag [#allocation4], %s250
        %s252 = sand.u32 %s58, 1
        %s253 = smul.addr %s252, 128
        %s254 = scalar_lea.vmem [#allocation3], %s253
        // Predicated region
        $region45: #{tpu_custom_call.1} parent=43 // pred_check
          %p255 = pneg %p71
        $region46: #{tpu_custom_call.1} parent=43 // pred_check_branch
          %257 = sbr.rel (%p255) target = $region48
        $region47: #{tpu_custom_call.1} parent=43 // pred_region
          %258 = dma.done %s251, 2048
        $region48: #{tpu_custom_call.1} parent=43 // pred_fallthru
          _
        %s259 = smul.u32 8, %s24
        %p260 = scmp.lt.s32.totalorder %s259, 31
        %s261 = scalar_select %p260, %s259, 31
        %s262 = smul.addr %s261, 8
        %s263 = scalar_lea.vmem %s0, %s262
        %p264 = pneg %p45
        %p265 = pneg %p42
        %s266 = sand.u32 %s58, 1
        %s267 = scalar_lea.sflag [#allocation4], %s266
        %s268 = sand.u32 %s58, 1
        %s269 = smul.addr %s268, 128
        %s270 = scalar_lea.vmem [#allocation3], %s269
        %p271 = pneg %p71
        %p272 = pneg %p68
        %p273 = pneg %p92
        %p274 = pneg %p89
        %p275 = pneg %p113
        %p276 = pneg %p110
        %p277 = pneg %p134
        %p278 = pneg %p131
        %p279 = pneg %p155
        %p280 = pneg %p152
        %p281 = pneg %p181
        %p282 = pneg %p178
        %s283 = sand.u32 %s168, 1
        %s284 = scalar_lea.sflag [#allocation5], %s283
        %s285 = sand.u32 %s168, 1
        %s286 = smul.addr %s285, 128
        %s287 = scalar_lea.vmem [#allocation6], %s286
        %s288 = smul.u32 8, %s24
        %p289 = scmp.lt.s32.totalorder %s288, 31
        %s290 = scalar_select %p289, %s288, 31
        %s291 = smul.addr %s290, 8
        %s292 = scalar_lea.vmem %s0, %s291
        %s293 = smul.u32 8, %s24
        %s294 = smul.u32 8, %s24
        %s295 = smul.u32 8, %s24
        %v296 = vld [vmem:[%s292] sm:$0xff]
        %v297 = vld [vmem:[%s292 + $0x8] sm:$0xff]
        %v298 = vld [vmem:[%s292 + $0x10] sm:$0xff]
        %v299 = vld [vmem:[%s292 + $0x18] sm:$0xff]
        %v300 = vld [vmem:[%s292 + $0x20] sm:$0xff]
        %v301 = vld [vmem:[%s292 + $0x28] sm:$0xff]
        %v302 = vld [vmem:[%s292 + $0x30] sm:$0xff]
        %v303 = vld [vmem:[%s292 + $0x38] sm:$0xff]
        %v304 = vld [vmem:[%s2] sm:$0xff]
        %v305 = vld [vmem:[%s2 + $0x8] sm:$0xff]
        %v306 = vld [vmem:[%s2 + $0x10] sm:$0xff]
        %v307 = vld [vmem:[%s2 + $0x18] sm:$0xff]
        %v308 = vld [vmem:[%s3] sm:$0x1]
        %v310 = vlaneseq
        %v311 = vshrl.u32 %v310, 7
        %v312 = vsub.s32 0, %v311
        %v313 = vrot.slane %v308, %v312
        %vm315 = vcmask 261120
        %v317 = vsel %vm315, %v296, 0
        %v320 = vsel %vm315, %v297, 0
        %v323 = vsel %vm315, %v298, 0
        %v326 = vsel %vm315, %v299, 0
        %v329 = vsel %vm315, %v300, 0
        %v332 = vsel %vm315, %v301, 0
        %v335 = vsel %vm315, %v302, 0
        %v338 = vsel %vm315, %v303, 0
        %340 = vmatprep.subr.mxu0 0.0
        %341 = vmatpush1.msra.mxu0 %v304
        %342 = vmatprep.subr.mxu0 0.0
        %343 = vmatpush1.msra.mxu0 %v305
        %344 = vmatprep.subr.mxu0 0.0
        %345 = vmatpush1.msra.mxu0 %v306
        %346 = vmatprep.subr.mxu0 0.0
        %347 = vmatpush1.msra.mxu0 %v307
        %348 = vmatprep.subr.mxu0 0.0
        %349 = vmatpush1.msra.mxu0 0.0
        %350 = vmatprep.subr.mxu0 0.0
        %351 = vmatpush1.msra.mxu0 0.0
        %352 = vmatprep.subr.mxu0 0.0
        %353 = vmatpush1.msra.mxu0 0.0
        %354 = vmatprep.subr.mxu0 0.0
        %355 = vmatpush1.msra.mxu0 0.0
        %356 = vmatprep.subr.mxu0 0.0
        %357 = vmatpush1.msra.mxu0 0.0
        %358 = vmatprep.subr.mxu0 0.0
        %359 = vmatpush1.msra.mxu0 0.0
        %360 = vmatprep.subr.mxu0 0.0
        %361 = vmatpush1.msra.mxu0 0.0
        %362 = vmatprep.subr.mxu0 0.0
        %363 = vmatpush1.msra.mxu0 0.0
        %364 = vmatprep.subr.mxu0 0.0
        %365 = vmatpush1.msra.mxu0 0.0
        %366 = vmatprep.subr.mxu0 0.0
        %367 = vmatpush1.msra.mxu0 0.0
        %368 = vmatprep.subr.mxu0 0.0
        %369 = vmatpush1.msra.mxu0 0.0
        %370 = vmatprep.subr.mxu0 0.0
        %371 = vmatpush1.msra.mxu0 0.0
        %372 = vmatprep.subr.mxu0 0.0
        %373 = vmatpush1.msra.mxu0 0.0
        %374 = vmatprep.subr.mxu0 0.0
        %375 = vmatpush1.msra.mxu0 0.0
        %376 = vmatprep.subr.mxu0 0.0
        %377 = vmatpush1.msra.mxu0 0.0
        %378 = vmatprep.subr.mxu0 0.0
        %379 = vmatpush1.msra.mxu0 0.0
        %380 = vmatprep.subr.mxu0 0.0
        %381 = vmatpush1.msra.mxu0 0.0
        %382 = vmatprep.subr.mxu0 0.0
        %383 = vmatpush1.msra.mxu0 0.0
        %384 = vmatprep.subr.mxu0 0.0
        %385 = vmatpush1.msra.mxu0 0.0
        %386 = vmatprep.subr.mxu0 0.0
        %387 = vmatpush1.msra.mxu0 0.0
        %388 = vmatprep.subr.mxu0 0.0
        %389 = vmatpush1.msra.mxu0 0.0
        %390 = vmatprep.subr.mxu0 0.0
        %391 = vmatpush1.msra.mxu0 0.0
        %392 = vmatprep.subr.mxu0 0.0
        %393 = vmatpush1.msra.mxu0 0.0
        %394 = vmatprep.subr.mxu0 0.0
        %395 = vmatpush1.msra.mxu0 0.0
        %396 = vmatprep.subr.mxu0 0.0
        %397 = vmatpush1.msra.mxu0 0.0
        %398 = vmatprep.subr.mxu0 0.0
        %399 = vmatpush1.msra.mxu0 0.0
        %400 = vmatprep.subr.mxu0 0.0
        %401 = vmatpush1.msra.mxu0 0.0
        %402 = vmatprep.subr.mxu0 0.0
        %403 = vmatpush1.msra.mxu0 0.0
        %404 = vmatprep.mubr.f32.mxu0 0.0
        %405 = vmatmul.mubr.f32.gmra.mrb[0].mxu0 %v317
        %v406 = vpop.f32.mrb[0].mxu0
        %v407 = vadd.f32 %v313, %v406
        %v408 = vpop.f32.mrb[0].mxu0
        %409 = vmatprep.mubr.f32.mxu0 0.0
        %410 = vmatmul.mubr.f32.gmra.mrb[0].mxu0 %v320
        %v411 = vpop.f32.mrb[0].mxu0
        %v412 = vadd.f32 %v313, %v411
        %v413 = vpop.f32.mrb[0].mxu0
        %414 = vmatprep.mubr.f32.mxu0 0.0
        %415 = vmatmul.mubr.f32.gmra.mrb[0].mxu0 %v323
        %v416 = vpop.f32.mrb[0].mxu0
        %v417 = vadd.f32 %v313, %v416
        %v418 = vpop.f32.mrb[0].mxu0
        %419 = vmatprep.mubr.f32.mxu0 0.0
        %420 = vmatmul.mubr.f32.gmra.mrb[0].mxu0 %v326
        %v421 = vpop.f32.mrb[0].mxu0
        %v422 = vadd.f32 %v313, %v421
        %v423 = vpop.f32.mrb[0].mxu0
        %424 = vmatprep.mubr.f32.mxu0 0.0
        %425 = vmatmul.mubr.f32.gmra.mrb[0].mxu0 %v329
        %v426 = vpop.f32.mrb[0].mxu0
        %v427 = vadd.f32 %v313, %v426
        %v428 = vpop.f32.mrb[0].mxu0
        %429 = vmatprep.mubr.f32.mxu0 0.0
        %430 = vmatmul.mubr.f32.gmra.mrb[0].mxu0 %v332
        %v431 = vpop.f32.mrb[0].mxu0
        %v432 = vadd.f32 %v313, %v431
        %v433 = vpop.f32.mrb[0].mxu0
        %434 = vmatprep.mubr.f32.mxu0 0.0
        %435 = vmatmul.mubr.f32.gmra.mrb[0].mxu0 %v335
        %v436 = vpop.f32.mrb[0].mxu0
        %v437 = vadd.f32 %v313, %v436
        %v438 = vpop.f32.mrb[0].mxu0
        %439 = vmatprep.mubr.f32.mxu0 0.0
        %440 = vmatmul.mubr.f32.gmra.mrb[0].mxu0 %v338
        %v441 = vpop.f32.mrb[0].mxu0
        %v442 = vadd.f32 %v313, %v441
        %v443 = vpop.f32.mrb[0].mxu0
        %444 = vdwg.mxu0
        %v445 = vmax.f32 %v407, 0.0
        %v446 = vmax.f32 %v412, 0.0
        %v447 = vmax.f32 %v417, 0.0
        %v448 = vmax.f32 %v422, 0.0
        %v449 = vmax.f32 %v427, 0.0
        %v450 = vmax.f32 %v432, 0.0
        %v451 = vmax.f32 %v437, 0.0
        %v452 = vmax.f32 %v442, 0.0
        %v453 = vld [vmem:[%s4] sm:$0x1]
        %v455 = vlaneseq
        %v456 = vshrl.u32 %v455, 7
        %v457 = vsub.s32 0, %v456
        %v458 = vrot.slane %v453, %v457
        %v460 = vmul.f32 %v445, %v458
        %v461 = vmul.f32 %v446, %v458
        %v462 = vmul.f32 %v447, %v458
        %v463 = vmul.f32 %v448, %v458
        %v464 = vmul.f32 %v449, %v458
        %v465 = vmul.f32 %v450, %v458
        %v466 = vmul.f32 %v451, %v458
        %v467 = vmul.f32 %v452, %v458
        %v468 = vsel %vm315, %v460, 0.0
        %469 = vadd.xlane.f32.xlu0 %v468
        %v470 = vpop.xlane.xlu0 %469
        %v471 = vsel %vm315, %v461, 0.0
        %472 = vadd.xlane.f32.xlu0 %v471
        %v473 = vpop.xlane.xlu0 %472
        %v474 = vsel %vm315, %v462, 0.0
        %475 = vadd.xlane.f32.xlu0 %v474
        %v476 = vpop.xlane.xlu0 %475
        %v477 = vsel %vm315, %v463, 0.0
        %478 = vadd.xlane.f32.xlu0 %v477
        %v479 = vpop.xlane.xlu0 %478
        %v480 = vsel %vm315, %v464, 0.0
        %481 = vadd.xlane.f32.xlu0 %v480
        %v482 = vpop.xlane.xlu0 %481
        %v483 = vsel %vm315, %v465, 0.0
        %484 = vadd.xlane.f32.xlu0 %v483
        %v485 = vpop.xlane.xlu0 %484
        %v486 = vsel %vm315, %v466, 0.0
        %487 = vadd.xlane.f32.xlu0 %v486
        %v488 = vpop.xlane.xlu0 %487
        %v489 = vsel %vm315, %v467, 0.0
        %490 = vadd.xlane.f32.xlu0 %v489
        %v491 = vpop.xlane.xlu0 %490
        %s492 = sld [smem:[#allocation2]]
        %v493 = vstv %s492
        %v494 = vadd.f32 %v470, %v493
        %v495 = vadd.f32 %v473, %v493
        %v496 = vadd.f32 %v476, %v493
        %v497 = vadd.f32 %v479, %v493
        %v498 = vadd.f32 %v482, %v493
        %v499 = vadd.f32 %v485, %v493
        %v500 = vadd.f32 %v488, %v493
        %v501 = vadd.f32 %v491, %v493
        %v502 = vxor.u32 %v494, 2147483648
        %v503 = vxor.u32 %v495, 2147483648
        %v504 = vxor.u32 %v496, 2147483648
        %v505 = vxor.u32 %v497, 2147483648
        %v506 = vxor.u32 %v498, 2147483648
        %v507 = vxor.u32 %v499, 2147483648
        %v508 = vxor.u32 %v500, 2147483648
        %v509 = vxor.u32 %v501, 2147483648
        %v510 = vmul.f32 %v502, 1.442695
        %v511 = vpow.pop %v510
        %v512 = vmul.f32 %v503, 1.442695
        %v513 = vpow.pop %v512
        %v514 = vmul.f32 %v504, 1.442695
        %v515 = vpow.pop %v514
        %v516 = vmul.f32 %v505, 1.442695
        %v517 = vpow.pop %v516
        %v518 = vmul.f32 %v506, 1.442695
        %v519 = vpow.pop %v518
        %v520 = vmul.f32 %v507, 1.442695
        %v521 = vpow.pop %v520
        %v522 = vmul.f32 %v508, 1.442695
        %v523 = vpow.pop %v522
        %v524 = vmul.f32 %v509, 1.442695
        %v525 = vpow.pop %v524
        %v526 = vadd.f32 %v511, 1.0
        %v527 = vadd.f32 %v513, 1.0
        %v528 = vadd.f32 %v515, 1.0
        %v529 = vadd.f32 %v517, 1.0
        %v530 = vadd.f32 %v519, 1.0
        %v531 = vadd.f32 %v521, 1.0
        %v532 = vadd.f32 %v523, 1.0
        %v533 = vadd.f32 %v525, 1.0
        %v534 = vrcp.pop %v526
        %v535 = vmul.f32 1.0, %v534
        %v536 = vrcp.pop %v527
        %v537 = vmul.f32 1.0, %v536
        %v538 = vrcp.pop %v528
        %v539 = vmul.f32 1.0, %v538
        %v540 = vrcp.pop %v529
        %v541 = vmul.f32 1.0, %v540
        %v542 = vrcp.pop %v530
        %v543 = vmul.f32 1.0, %v542
        %v544 = vrcp.pop %v531
        %v545 = vmul.f32 1.0, %v544
        %v546 = vrcp.pop %v532
        %v547 = vmul.f32 1.0, %v546
        %v548 = vrcp.pop %v533
        %v549 = vmul.f32 1.0, %v548
        %v550 = vmul.f32 %v296, %v535
        %v551 = vmul.f32 %v297, %v537
        %v552 = vmul.f32 %v298, %v539
        %v553 = vmul.f32 %v299, %v541
        %v554 = vmul.f32 %v300, %v543
        %v555 = vmul.f32 %v301, %v545
        %v556 = vmul.f32 %v302, %v547
        %v557 = vmul.f32 %v303, %v549
        %566 = vrot.lane.b32.xlu0 %v550, 32
        %v567 = vpop.permute.xlu0 %566
        %568 = vrot.lane.b32.xlu0 %v551, 32
        %v569 = vpop.permute.xlu0 %568
        %570 = vrot.lane.b32.xlu0 %v552, 32
        %v571 = vpop.permute.xlu0 %570
        %572 = vrot.lane.b32.xlu0 %v553, 32
        %v573 = vpop.permute.xlu0 %572
        %574 = vrot.lane.b32.xlu0 %v554, 32
        %v575 = vpop.permute.xlu0 %574
        %576 = vrot.lane.b32.xlu0 %v555, 32
        %v577 = vpop.permute.xlu0 %576
        %578 = vrot.lane.b32.xlu0 %v556, 32
        %v579 = vpop.permute.xlu0 %578
        %580 = vrot.lane.b32.xlu0 %v557, 32
        %v581 = vpop.permute.xlu0 %580
        %590 = vrot.lane.b32.xlu0 %v550, 64
        %v591 = vpop.permute.xlu0 %590
        %592 = vrot.lane.b32.xlu0 %v551, 64
        %v593 = vpop.permute.xlu0 %592
        %594 = vrot.lane.b32.xlu0 %v552, 64
        %v595 = vpop.permute.xlu0 %594
        %596 = vrot.lane.b32.xlu0 %v553, 64
        %v597 = vpop.permute.xlu0 %596
        %598 = vrot.lane.b32.xlu0 %v554, 64
        %v599 = vpop.permute.xlu0 %598
        %600 = vrot.lane.b32.xlu0 %v555, 64
        %v601 = vpop.permute.xlu0 %600
        %602 = vrot.lane.b32.xlu0 %v556, 64
        %v603 = vpop.permute.xlu0 %602
        %604 = vrot.lane.b32.xlu0 %v557, 64
        %v605 = vpop.permute.xlu0 %604
        %614 = vrot.lane.b32.xlu0 %v550, 96
        %v615 = vpop.permute.xlu0 %614
        %616 = vrot.lane.b32.xlu0 %v551, 96
        %v617 = vpop.permute.xlu0 %616
        %618 = vrot.lane.b32.xlu0 %v552, 96
        %v619 = vpop.permute.xlu0 %618
        %620 = vrot.lane.b32.xlu0 %v553, 96
        %v621 = vpop.permute.xlu0 %620
        %622 = vrot.lane.b32.xlu0 %v554, 96
        %v623 = vpop.permute.xlu0 %622
        %624 = vrot.lane.b32.xlu0 %v555, 96
        %v625 = vpop.permute.xlu0 %624
        %626 = vrot.lane.b32.xlu0 %v556, 96
        %v627 = vpop.permute.xlu0 %626
        %628 = vrot.lane.b32.xlu0 %v557, 96
        %v629 = vpop.permute.xlu0 %628
        %v638 = vsel %vm315, %v550, %v567
        %v639 = vsel %vm315, %v551, %v569
        %v640 = vsel %vm315, %v552, %v571
        %v641 = vsel %vm315, %v553, %v573
        %v642 = vsel %vm315, %v554, %v575
        %v643 = vsel %vm315, %v555, %v577
        %v644 = vsel %vm315, %v556, %v579
        %v645 = vsel %vm315, %v557, %v581
        %vm646 = vcmask 523264
        %v647 = vsel %vm646, %v638, %v591
        %v648 = vsel %vm646, %v639, %v593
        %v649 = vsel %vm646, %v640, %v595
        %v650 = vsel %vm646, %v641, %v597
        %v651 = vsel %vm646, %v642, %v599
        %v652 = vsel %vm646, %v643, %v601
        %v653 = vsel %vm646, %v644, %v603
        %v654 = vsel %vm646, %v645, %v605
        %vm655 = vcmask 785408
        %v656 = vsel %vm655, %v647, %v615
        %v657 = vsel %vm655, %v648, %v617
        %v658 = vsel %vm655, %v649, %v619
        %v659 = vsel %vm655, %v650, %v621
        %v660 = vsel %vm655, %v651, %v623
        %v661 = vsel %vm655, %v652, %v625
        %v662 = vsel %vm655, %v653, %v627
        %v663 = vsel %vm655, %v654, %v629
        %v664 = vld [vmem:[%s254] sm:$0xff]
        %v665 = vld [vmem:[%s254 + $0x10] sm:$0xff]
        %v666 = vld [vmem:[%s254 + $0x20] sm:$0xff]
        %v667 = vld [vmem:[%s254 + $0x30] sm:$0xff]
        %v668 = vld [vmem:[%s254 + $0x40] sm:$0xff]
        %v669 = vld [vmem:[%s254 + $0x50] sm:$0xff]
        %v670 = vld [vmem:[%s254 + $0x60] sm:$0xff]
        %v671 = vld [vmem:[%s254 + $0x70] sm:$0xff]
        %v672 = vadd.f32 %v664, %v656
        %v673 = vadd.f32 %v665, %v657
        %v674 = vadd.f32 %v666, %v658
        %v675 = vadd.f32 %v667, %v659
        %v676 = vadd.f32 %v668, %v660
        %v677 = vadd.f32 %v669, %v661
        %v678 = vadd.f32 %v670, %v662
        %v679 = vadd.f32 %v671, %v663
        %680 = vst [vmem:[%s287] sm:$0xff] %v672
        %681 = vst [vmem:[%s287 + $0x10] sm:$0xff] %v673
        %682 = vst [vmem:[%s287 + $0x20] sm:$0xff] %v674
        %683 = vst [vmem:[%s287 + $0x30] sm:$0xff] %v675
        %684 = vst [vmem:[%s287 + $0x40] sm:$0xff] %v676
        %685 = vst [vmem:[%s287 + $0x50] sm:$0xff] %v677
        %686 = vst [vmem:[%s287 + $0x60] sm:$0xff] %v678
        %687 = vst [vmem:[%s287 + $0x70] sm:$0xff] %v679
        %v688 = vld [vmem:[%s254 + $0x8] sm:$0xff]
        %v689 = vld [vmem:[%s254 + $0x18] sm:$0xff]
        %v690 = vld [vmem:[%s254 + $0x28] sm:$0xff]
        %v691 = vld [vmem:[%s254 + $0x38] sm:$0xff]
        %v692 = vld [vmem:[%s254 + $0x48] sm:$0xff]
        %v693 = vld [vmem:[%s254 + $0x58] sm:$0xff]
        %v694 = vld [vmem:[%s254 + $0x68] sm:$0xff]
        %v695 = vld [vmem:[%s254 + $0x78] sm:$0xff]
        %v696 = vadd.f32 %v688, %v656
        %v697 = vadd.f32 %v689, %v657
        %v698 = vadd.f32 %v690, %v658
        %v699 = vadd.f32 %v691, %v659
        %v700 = vadd.f32 %v692, %v660
        %v701 = vadd.f32 %v693, %v661
        %v702 = vadd.f32 %v694, %v662
        %v703 = vadd.f32 %v695, %v663
        %704 = vst [vmem:[%s287 + $0x8] sm:$0xff] %v696
        %705 = vst [vmem:[%s287 + $0x18] sm:$0xff] %v697
        %706 = vst [vmem:[%s287 + $0x28] sm:$0xff] %v698
        %707 = vst [vmem:[%s287 + $0x38] sm:$0xff] %v699
        %708 = vst [vmem:[%s287 + $0x48] sm:$0xff] %v700
        %709 = vst [vmem:[%s287 + $0x58] sm:$0xff] %v701
        %710 = vst [vmem:[%s287 + $0x68] sm:$0xff] %v702
        %711 = vst [vmem:[%s287 + $0x78] sm:$0xff] %v703
        %s712 = sand.u32 %s168, 1
        %s713 = scalar_lea.sflag [#allocation5], %s712
        %s714 = sand.u32 %s168, 1
        %s715 = smul.addr %s714, 128
        %s716 = scalar_lea.vmem [#allocation6], %s715
        // Predicated region
        $region49: #{tpu_custom_call.1} parent=43 // pred_check
          %p717 = pneg %p178
        $region50: #{tpu_custom_call.1} parent=43 // pred_check_branch
          %719 = sbr.rel (%p717) target = $region52
        $region51: #{tpu_custom_call.1} parent=43 // pred_region
          %s720 = smul.u32 8, %s24
          %s722 = ssub.s32 2048, 2048
          %723 = vsyncadd %s713, %s722
          %s724 = smul.addr %s720, 2
          %s725 = smul.addr %s724, 128
          %s726 = scalar_lea.hbm %s6, %s725
          %s727 = sshll.u32 %s716, 4
          %s728 = int_to_ptr.vmem [resolvable:$true] %s727
          %733 = dma.vmem_to_hbm [thread:$0]  %s728, 2048, %s726, %s713, 256, 256, 16
        $region52: #{tpu_custom_call.1} parent=43 // pred_fallthru
          _
      $region44: #{tpu_custom_call.1} parent=5 // pred_fallthru
        _
      %p734 = scmp.le.s32.totalorder 2, %s19
      // Predicated region
      $region53: #{tpu_custom_call.1} parent=5 // pred_check
        %p735 = pneg %p734
      $region54: #{tpu_custom_call.1} parent=5 // pred_check_branch
        %737 = sbr.rel (%p735) target = $region56
      $region55: #{tpu_custom_call.1} parent=5 // pred_region
        %s738 = ssub.s32 %s19, 2
        // Predicated region
        $region57: #{tpu_custom_call.1} parent=55 // pred_check
          %p739 = pneg %p184
        $region58: #{tpu_custom_call.1} parent=55 // pred_check_branch
          %741 = sbr.rel (%p739) target = $region60
        $region59: #{tpu_custom_call.1} parent=55 // pred_region
          %s742 = sand.u32 %s169, 1
          %s743 = scalar_lea.sflag [#allocation5], %s742
          %s744 = sand.u32 %s169, 1
          %s745 = smul.addr %s744, 128
          %s746 = scalar_lea.vmem [#allocation6], %s745
          %747 = dma.done %s743, 2048
        $region60: #{tpu_custom_call.1} parent=55 // pred_fallthru
          _
      $region56: #{tpu_custom_call.1} parent=5 // pred_fallthru
        _
    $region6: #{tpu_custom_call.1} parent=1 // loop_footer
      %s23 = sadd.s32 1, %s19
    $region7: #{tpu_custom_call.1} parent=1 // loop_footer_branch
      %18 = sbr.rel target = $region3
    $region8: #{tpu_custom_call.1} parent=1 // loop_exit
      _
    %748 = vsyncpa [#allocation4], 1
    %s749 = scalar_lea.sflag [#allocation4], 1
    %750 = vsyncpa %s749, 1
    %751 = vsyncpa [#allocation5], 1
    %s752 = scalar_lea.sflag [#allocation5], 1
    %753 = vsyncpa %s752, 1

</llo_original>
